<compile_context>
chip_gen: v6e
topology: v6e:2x2x1
jax: 0.10.0
libtpu: 0.0.40
codegen_flags: <defaults>
</compile_context>

<pallas_src>
import functools

import jax
import jax.numpy as jnp
from jax.experimental import pallas as pl
from jax.experimental.pallas import tpu as pltpu

ALPHA = 100.0  # global `alpha` used in forward()

# Polynomial coefficients of internal_loss2a, ascending powers of (x - 0.25).
_POLY_COEFFS = (
    3.388812515157282,
    -29.777405993083043,
    30.337557708081047,
    -61.81649320998202,
    157.44835450951092,
    -449.14845563901287,
    1372.7925658409486,
    -4395.652103938753,
    14554.605110543052,
    -49427.98717501882,
    171216.49234524113,
)


def _pil_kernel(sm_ref, cols_ref, out_ref, data_ref, lat_ref, tlat_ref,
                loss_ref, facc_ref, lacc_ref, *, alpha, n_valid, n_lat):
    """One batch tile of the loss.

    sm_ref   : SMEM f32[8]          = [tmean0..3, tstd0..3]
    cols_ref : VMEM f32[5, 3]       = [feature_mins | feature_maxs | mse_w/14]
    out_ref  : VMEM f32[5, tn]        model output   (feature-major, lane=batch)
    data_ref : VMEM f32[5, tn]        targets
    lat_ref  : VMEM f32[L, 8, tn/8]   latent        (sublane-dense per row)
    tlat_ref : VMEM f32[L, 8, tn/8]   target latent (same packing)
    loss_ref : SMEM f32[1]            scalar output
    facc_ref : VMEM f32[5, tn]        vector accumulator, feature-space terms
    lacc_ref : VMEM f32[8, tn/8]      vector accumulator, latent-space terms
    """
    i = pl.program_id(0)
    last = pl.num_programs(0) - 1

    @pl.when(i == 0)
    def _init():
        facc_ref[...] = jnp.zeros_like(facc_ref)
        lacc_ref[...] = jnp.zeros_like(lacc_ref)
        loss_ref[0] = jnp.float32(0.0)

    inv_n = 1.0 / float(n_valid)

    # ---- feature-space terms on the (5, tn) block ---------------------------
    #   weighted MSE contribution + boundary penalty, elementwise, accumulated
    out = out_ref[...]
    data = data_ref[...]
    mins = cols_ref[:, 0:1]          # (5, 1)
    maxs = cols_ref[:, 1:2]          # (5, 1)
    wmse = cols_ref[:, 2:3]          # (5, 1) = [1,1,1,10,1] / 14

    diff = out - data
    lo = jnp.maximum(mins - out, 0.0)
    hi = jnp.maximum(out - maxs, 0.0)
    facc_ref[...] += (inv_n * wmse) * (diff * diff) + (lo * lo + hi * hi)

    # ---- latent-space terms on full-occupancy (8, tn/8) slabs ---------------
    # physical loss: sum over latent dims of squared diffs (pure vadds).
    d = lat_ref[0] - tlat_ref[0]
    phys = d * d
    for r in range(1, n_lat):
        d = lat_ref[r] - tlat_ref[r]
        phys = phys + d * d

    tm0, tm1, tm2, tm3 = sm_ref[0], sm_ref[1], sm_ref[2], sm_ref[3]
    ts0, ts1, ts2, ts3 = sm_ref[4], sm_ref[5], sm_ref[6], sm_ref[7]

    l0 = lat_ref[0] * ts0 + tm0      # denormalized latent rows, (8, tn/8)
    l1 = lat_ref[1] * ts1 + tm1
    l2 = lat_ref[2] * ts2 + tm2
    l3 = lat_ref[3] * ts3 + tm3
    t3 = tlat_ref[3] * ts3 + tm3

    # internal_loss residual: denorm(lat0)*1.47/denorm(lat1) - denorm(tgt_lat3)
    r_int = l0 * 1.47 * pl.reciprocal(l1, approx=True) - t3

    # internal_loss2a residual: poly(denorm(lat3) - 0.25) - denorm(lat2)
    x = l3 - 0.25
    poly = x * _POLY_COEFFS[10] + _POLY_COEFFS[9]
    for c in _POLY_COEFFS[8::-1]:    # Horner, descending powers
        poly = poly * x + c
    r2 = poly - l2

    lacc_ref[...] += (inv_n * (r_int * r_int + 0.1 * (r2 * r2))
                      + (float(alpha) * inv_n / float(n_lat)) * phys)

    # ---- single scalar reduction, only on the last grid step ----------------
    @pl.when(i == last)
    def _fin():
        loss_ref[0] = jnp.sum(facc_ref[...]) + jnp.sum(lacc_ref[...])


def physics_informed_loss(output, data, latent, target_latent,
                          feature_mins, feature_maxs,
                          target_mean, target_std,
                          alpha=ALPHA, tile_n=65536):
    """Pallas implementation of PhysicsInformedLoss.forward (returns a scalar)."""
    f32 = jnp.float32
    output = jnp.asarray(output, f32)
    data = jnp.asarray(data, f32)
    latent = jnp.asarray(latent, f32)
    target_latent = jnp.asarray(target_latent, f32)

    n, n_feat = output.shape
    n_lat = latent.shape[1]
    assert n_feat == 5, "PhysicsInformedLoss expects 5 output features"
    assert n_lat >= 4, "latent must have at least 4 features"

    mins = jnp.asarray(feature_mins, f32).reshape(-1)[:n_feat]
    maxs = jnp.asarray(feature_maxs, f32).reshape(-1)[:n_feat]
    tm4 = jnp.asarray(target_mean, f32).reshape(-1)[:4]
    ts4 = jnp.asarray(target_std, f32).reshape(-1)[:4]

    # --- tile selection: multiples of 1024 (=8*128) so the packed latent slabs
    #     keep 128-wide lanes; capped so double-buffered footprint fits v7x ----
    LANE_BLK = 1024
    tn = max(LANE_BLK, (int(tile_n) // LANE_BLK) * LANE_BLK)
    tn = min(tn, 128 * LANE_BLK)                       # 131072-element hard cap
    n_pad_min = ((n + LANE_BLK - 1) // LANE_BLK) * LANE_BLK
    tn = min(tn, n_pad_min)                            # small N -> grid=(1,)
    n_pad = ((n + tn - 1) // tn) * tn
    tm = tn // 8
    num_tiles = n_pad // tn
    pad = n_pad - n

    # --- padding values chosen so padded elements contribute EXACTLY zero ----
    if pad:
        mid = 0.5 * (mins + maxs)                      # inside [mins, maxs]
        # NOTE: if a target_std entry is exactly 0 (degenerate), padded lanes
        # may contribute a tiny nonzero amount; guarded only against inf/nan.
        ts_safe = jnp.where(jnp.abs(ts4) < 1e-30, jnp.ones_like(ts4), ts4)
        lp = jnp.stack([(0.25 / 1.47 - tm4[0]) / ts_safe[0],   # ratio -> 0
                        (1.0 - tm4[1]) / ts_safe[1],           # denom -> 1
                        (_POLY_COEFFS[0] - tm4[2]) / ts_safe[2],  # poly -> 0
                        (0.25 - tm4[3]) / ts_safe[3]])            # x -> 0
        lat_pad = jnp.concatenate([lp, jnp.zeros((n_lat - 4,), f32)])

    def prep_feat(x):                                  # (n, 5) -> (5, n_pad)
        xt = x.T
        if pad:
            xt = jnp.concatenate(
                [xt, jnp.broadcast_to(mid[:, None], (n_feat, pad))], axis=1)
        return xt

    def prep_lat(x):                                   # (n, L) -> (L, 8, n_pad/8)
        xt = x.T
        if pad:
            xt = jnp.concatenate(
                [xt, jnp.broadcast_to(lat_pad[:, None], (n_lat, pad))], axis=1)
        return xt.reshape(n_lat, 8, n_pad // 8)

    out_t = prep_feat(output)
    data_t = prep_feat(data)
    lat_p = prep_lat(latent)
    tlat_p = prep_lat(target_latent)

    # tiny per-feature parameters as ONE small VMEM operand (fixes the
    # captured-constant error and removes per-scalar splats in the kernel)
    wmse = jnp.array([1.0, 1.0, 1.0, 10.0, 1.0], f32) / 14.0
    cols = jnp.stack([mins, maxs, wmse], axis=1)       # (5, 3)
    sm_params = jnp.concatenate([tm4, ts4])            # (8,) SMEM scalars

    kernel = functools.partial(_pil_kernel, alpha=float(alpha),
                               n_valid=n, n_lat=n_lat)

    # explicit VMEM budget: 2x double-buffered streamed inputs + accumulators,
    # floor 32 MiB (covers v5e's 16 MiB default), ceiling safe for v7x (64 MiB)
    step_bytes = (2 * n_feat + 2 * n_lat) * 4 * tn
    scratch_bytes = (n_feat * tn + 8 * tm) * 4
    vmem_limit = max(32 * 1024 * 1024,
                     min(2 * step_bytes + scratch_bytes + (4 << 20),
                         56 * 1024 * 1024))

    loss = pl.pallas_call(
        kernel,
        out_shape=jax.ShapeDtypeStruct((1,), f32),
        grid=(num_tiles,),
        in_specs=[
            pl.BlockSpec(memory_space=pltpu.MemorySpace.SMEM),      # sm_params
            pl.BlockSpec((n_feat, 3), lambda i: (0, 0)),            # cols
            pl.BlockSpec((n_feat, tn), lambda i: (0, i)),           # output
            pl.BlockSpec((n_feat, tn), lambda i: (0, i)),           # data
            pl.BlockSpec((n_lat, 8, tm), lambda i: (0, 0, i)),      # latent
            pl.BlockSpec((n_lat, 8, tm), lambda i: (0, 0, i)),      # target_latent
        ],
        out_specs=pl.BlockSpec(memory_space=pltpu.MemorySpace.SMEM),
        scratch_shapes=[pltpu.VMEM((n_feat, tn), f32),              # facc
                        pltpu.VMEM((8, tm), f32)],                  # lacc
        compiler_params=pltpu.CompilerParams(
            dimension_semantics=("arbitrary",),                     # accumulators
            vmem_limit_bytes=int(vmem_limit)),
    )(sm_params, cols, out_t, data_t, lat_p, tlat_p)
    return loss[0]


def _reference(output, data, latent, target_latent,
               feature_mins, feature_maxs, target_mean, target_std, alpha=ALPHA):
    """Pure-JAX reference mirroring the PyTorch forward (for sanity checking)."""
    mse = lambda a, b: jnp.mean((a - b) ** 2)
    denorm = lambda t, m, s: t * s + m
    mse_loss = (mse(output[:, 0], data[:, 0]) + mse(output[:, 1], data[:, 1])
                + mse(output[:, 2], data[:, 2]) + 10 * mse(output[:, 3], data[:, 3])
                + mse(output[:, 4], data[:, 4])) / 14
    low = jnp.maximum(feature_mins[None, :] - output, 0.0)
    up = jnp.maximum(output - feature_maxs[None, :], 0.0)
    boundary = jnp.sum(low * low + up * up)
    internal = mse(denorm(latent[:, 0], target_mean[0], target_std[0]) * 1.47
                   / denorm(latent[:, 1], target_mean[1], target_std[1]),
                   denorm(target_latent[:, 3], target_mean[3], target_std[3]))
    x = denorm(latent[:, 3], target_mean[3], target_std[3]) - 0.25
    poly = sum(c * x ** i for i, c in enumerate(_POLY_COEFFS))
    internal2a = mse(poly, denorm(latent[:, 2], target_mean[2], target_std[2]))
    physical = mse(latent, target_latent)
    return mse_loss + alpha * physical + internal + boundary + 0.1 * internal2a


if __name__ == "__main__":
    key = jax.random.PRNGKey(0)
    # N chosen so the (small) test exercises: multi-step accumulator grid
    # (3 tiles at tile_n=1024), zero-contribution padding (572 padded elems),
    # and the sublane-packed latent slabs.
    N, F, L = 2500, 5, 8
    k = jax.random.split(key, 4)

    output = jax.random.normal(k[0], (N, F), jnp.float32)
    data = jax.random.normal(k[1], (N, F), jnp.float32)
    latent = jax.random.normal(k[2], (N, L), jnp.float32)
    target_latent = latent + 0.1 * jax.random.normal(k[3], (N, L), jnp.float32)

    feature_mins = jnp.min(data, axis=0) - 0.5
    feature_maxs = jnp.max(data, axis=0) - 0.5   # offset so boundary penalty is nonzero

    # deterministic "global" target stats (chosen so denorm(latent[:,1]) stays
    # away from zero and the degree-10 polynomial stays well-conditioned)
    target_mean = jnp.array([1.5, 1.0, 3.0, 0.30, 0.8, 0.5, 0.2, 0.1], jnp.float32)
    target_std = jnp.array([0.20, 0.15, 0.30, 0.05, 0.10, 0.20, 0.10, 0.30], jnp.float32)

    loss = physics_informed_loss(output, data, latent, target_latent,
                                 feature_mins, feature_maxs,
                                 target_mean, target_std, tile_n=1024)
    jax.block_until_ready(loss)

    ref = _reference(output, data, latent, target_latent,
                     feature_mins, feature_maxs, target_mean, target_std)
    # tolerance covers f32 (vs PyTorch f64) and the approx-reciprocal path
    assert jnp.allclose(loss, ref, rtol=2e-3, atol=2e-3), (loss, ref)

    # TODO(synk): PyTorch reference computes in float64; TPU Pallas has no f64
    # vector path, so this kernel computes in float32.
    print("KERNEL_OK")
</pallas_src>

<mosaic_0001>
module attributes {stable_mosaic.version = 11 : i64} {
  func.func @_pil_kernel(%arg0: i32, %arg1: memref<8xf32, #tpu.memory_space<smem>>, %arg2: memref<5x3xf32, #tpu.memory_space<vmem>>, %arg3: memref<5x1024xf32, #tpu.memory_space<vmem>>, %arg4: memref<5x1024xf32, #tpu.memory_space<vmem>>, %arg5: memref<8x8x128xf32, #tpu.memory_space<vmem>>, %arg6: memref<8x8x128xf32, #tpu.memory_space<vmem>>, %arg7: memref<1xf32, #tpu.memory_space<smem>>, %arg8: memref<5x1024xf32, #tpu.memory_space<vmem>>, %arg9: memref<8x128xf32, #tpu.memory_space<vmem>>) attributes {dimension_semantics = [#tpu.dimension_semantics<arbitrary>], iteration_bounds = array<i64: 3>, scalar_prefetch = 0 : i64, scratch_operands = 2 : i64, tpu.core_type = #tpu.core_type<tc>, window_params = [{transform_indices = @transform_0, window_bounds = array<i64: 8>}, {pipeline_mode = #tpu.pipeline_mode<synchronous>, transform_indices = @transform_1, window_bounds = array<i64: 5, 3>}, {transform_indices = @transform_2, window_bounds = array<i64: 5, 1024>}, {transform_indices = @transform_3, window_bounds = array<i64: 5, 1024>}, {transform_indices = @transform_4, window_bounds = array<i64: 8, 8, 128>}, {transform_indices = @transform_5, window_bounds = array<i64: 8, 8, 128>}, {transform_indices = @transform_6, window_bounds = array<i64: 1>}]} {
    %c0_i32 = arith.constant 0 : i32
    %0 = arith.cmpi eq, %arg0, %c0_i32 : i32
    %1 = arith.extui %0 : i1 to i32
    %c0_i32_0 = arith.constant 0 : i32
    %2 = arith.cmpi ne, %1, %c0_i32_0 : i32
    scf.if %2 {
      %cst_101 = arith.constant 0.000000e+00 : f32
      %177 = vector.broadcast %cst_101 : f32 to vector<5x1024xf32>
      %c0_102 = arith.constant 0 : index
      %c0_103 = arith.constant 0 : index
      %178 = vector.load %arg8[%c0_102, %c0_103] : memref<5x1024xf32, #tpu.memory_space<vmem>>, vector<5x1024xf32>
      tpu.vector_store %arg8[%c0_102, %c0_103], %177 {strides = array<i32>} : memref<5x1024xf32, #tpu.memory_space<vmem>>, vector<5x1024xf32>,
      %cst_104 = arith.constant 0.000000e+00 : f32
      %179 = vector.broadcast %cst_104 : f32 to vector<8x128xf32>
      %c0_105 = arith.constant 0 : index
      %c0_106 = arith.constant 0 : index
      %180 = vector.load %arg9[%c0_105, %c0_106] : memref<8x128xf32, #tpu.memory_space<vmem>>, vector<8x128xf32>
      tpu.vector_store %arg9[%c0_105, %c0_106], %179 {strides = array<i32>} : memref<8x128xf32, #tpu.memory_space<vmem>>, vector<8x128xf32>,
      %cst_107 = arith.constant 0.000000e+00 : f32
      %c0_108 = arith.constant 0 : index
      %181 = memref.load %arg7[%c0_108] : memref<1xf32, #tpu.memory_space<smem>>
      memref.store %cst_107, %arg7[%c0_108] : memref<1xf32, #tpu.memory_space<smem>>
    } else {
    }
    %c0 = arith.constant 0 : index
    %c0_1 = arith.constant 0 : index
    %3 = vector.load %arg3[%c0, %c0_1] : memref<5x1024xf32, #tpu.memory_space<vmem>>, vector<5x1024xf32>
    %c0_2 = arith.constant 0 : index
    %c0_3 = arith.constant 0 : index
    %4 = vector.load %arg4[%c0_2, %c0_3] : memref<5x1024xf32, #tpu.memory_space<vmem>>, vector<5x1024xf32>
    %c0_4 = arith.constant 0 : index
    %c0_5 = arith.constant 0 : index
    %5 = vector.load %arg2[%c0_4, %c0_5] : memref<5x3xf32, #tpu.memory_space<vmem>>, vector<5x1xf32>
    %c0_6 = arith.constant 0 : index
    %c1 = arith.constant 1 : index
    %6 = vector.load %arg2[%c0_6, %c1] : memref<5x3xf32, #tpu.memory_space<vmem>>, vector<5x1xf32>
    %c0_7 = arith.constant 0 : index
    %c2 = arith.constant 2 : index
    %7 = vector.load %arg2[%c0_7, %c2] : memref<5x3xf32, #tpu.memory_space<vmem>>, vector<5x1xf32>
    %8 = arith.subf %3, %4 : vector<5x1024xf32>
    %9 = vector.broadcast %5 : vector<5x1xf32> to vector<5x1024xf32>
    %10 = arith.subf %9, %3 : vector<5x1024xf32>
    %cst = arith.constant 0.000000e+00 : f32
    %11 = vector.broadcast %cst : f32 to vector<5x1024xf32>
    %12 = arith.maximumf %10, %11 : vector<5x1024xf32>
    %13 = vector.broadcast %6 : vector<5x1xf32> to vector<5x1024xf32>
    %14 = arith.subf %3, %13 : vector<5x1024xf32>
    %cst_8 = arith.constant 0.000000e+00 : f32
    %15 = vector.broadcast %cst_8 : f32 to vector<5x1024xf32>
    %16 = arith.maximumf %14, %15 : vector<5x1024xf32>
    %c0_9 = arith.constant 0 : index
    %c0_10 = arith.constant 0 : index
    %17 = vector.load %arg8[%c0_9, %c0_10] : memref<5x1024xf32, #tpu.memory_space<vmem>>, vector<5x1024xf32>
    %cst_11 = arith.constant 4.000000e-04 : f32
    %18 = vector.broadcast %cst_11 : f32 to vector<5x1xf32>
    %19 = arith.mulf %18, %7 : vector<5x1xf32>
    %20 = arith.mulf %8, %8 : vector<5x1024xf32>
    %21 = vector.broadcast %19 : vector<5x1xf32> to vector<5x1024xf32>
    %22 = arith.mulf %21, %20 : vector<5x1024xf32>
    %23 = arith.mulf %12, %12 : vector<5x1024xf32>
    %24 = arith.mulf %16, %16 : vector<5x1024xf32>
    %25 = arith.addf %23, %24 : vector<5x1024xf32>
    %26 = arith.addf %22, %25 : vector<5x1024xf32>
    %27 = arith.addf %17, %26 : vector<5x1024xf32>
    %c0_12 = arith.constant 0 : index
    %c0_13 = arith.constant 0 : index
    %28 = vector.load %arg8[%c0_12, %c0_13] : memref<5x1024xf32, #tpu.memory_space<vmem>>, vector<5x1024xf32>
    tpu.vector_store %arg8[%c0_12, %c0_13], %27 {strides = array<i32>} : memref<5x1024xf32, #tpu.memory_space<vmem>>, vector<5x1024xf32>,
    %c0_14 = arith.constant 0 : index
    %c0_15 = arith.constant 0 : index
    %c0_16 = arith.constant 0 : index
    %29 = vector.load %arg5[%c0_14, %c0_15, %c0_16] : memref<8x8x128xf32, #tpu.memory_space<vmem>>, vector<1x8x128xf32>
    %30 = vector.shape_cast %29 : vector<1x8x128xf32> to vector<8x128xf32>
    %c0_17 = arith.constant 0 : index
    %c0_18 = arith.constant 0 : index
    %c0_19 = arith.constant 0 : index
    %31 = vector.load %arg6[%c0_17, %c0_18, %c0_19] : memref<8x8x128xf32, #tpu.memory_space<vmem>>, vector<1x8x128xf32>
    %32 = vector.shape_cast %31 : vector<1x8x128xf32> to vector<8x128xf32>
    %33 = arith.subf %30, %32 : vector<8x128xf32>
    %34 = arith.mulf %33, %33 : vector<8x128xf32>
    %c1_20 = arith.constant 1 : index
    %c0_21 = arith.constant 0 : index
    %c0_22 = arith.constant 0 : index
    %35 = vector.load %arg5[%c1_20, %c0_21, %c0_22] : memref<8x8x128xf32, #tpu.memory_space<vmem>>, vector<1x8x128xf32>
    %36 = vector.shape_cast %35 : vector<1x8x128xf32> to vector<8x128xf32>
    %c1_23 = arith.constant 1 : index
    %c0_24 = arith.constant 0 : index
    %c0_25 = arith.constant 0 : index
    %37 = vector.load %arg6[%c1_23, %c0_24, %c0_25] : memref<8x8x128xf32, #tpu.memory_space<vmem>>, vector<1x8x128xf32>
    %38 = vector.shape_cast %37 : vector<1x8x128xf32> to vector<8x128xf32>
    %39 = arith.subf %36, %38 : vector<8x128xf32>
    %40 = arith.mulf %39, %39 : vector<8x128xf32>
    %41 = arith.addf %34, %40 : vector<8x128xf32>
    %c2_26 = arith.constant 2 : index
    %c0_27 = arith.constant 0 : index
    %c0_28 = arith.constant 0 : index
    %42 = vector.load %arg5[%c2_26, %c0_27, %c0_28] : memref<8x8x128xf32, #tpu.memory_space<vmem>>, vector<1x8x128xf32>
    %43 = vector.shape_cast %42 : vector<1x8x128xf32> to vector<8x128xf32>
    %c2_29 = arith.constant 2 : index
    %c0_30 = arith.constant 0 : index
    %c0_31 = arith.constant 0 : index
    %44 = vector.load %arg6[%c2_29, %c0_30, %c0_31] : memref<8x8x128xf32, #tpu.memory_space<vmem>>, vector<1x8x128xf32>
    %45 = vector.shape_cast %44 : vector<1x8x128xf32> to vector<8x128xf32>
    %46 = arith.subf %43, %45 : vector<8x128xf32>
    %47 = arith.mulf %46, %46 : vector<8x128xf32>
    %48 = arith.addf %41, %47 : vector<8x128xf32>
    %c3 = arith.constant 3 : index
    %c0_32 = arith.constant 0 : index
    %c0_33 = arith.constant 0 : index
    %49 = vector.load %arg5[%c3, %c0_32, %c0_33] : memref<8x8x128xf32, #tpu.memory_space<vmem>>, vector<1x8x128xf32>
    %50 = vector.shape_cast %49 : vector<1x8x128xf32> to vector<8x128xf32>
    %c3_34 = arith.constant 3 : index
    %c0_35 = arith.constant 0 : index
    %c0_36 = arith.constant 0 : index
    %51 = vector.load %arg6[%c3_34, %c0_35, %c0_36] : memref<8x8x128xf32, #tpu.memory_space<vmem>>, vector<1x8x128xf32>
    %52 = vector.shape_cast %51 : vector<1x8x128xf32> to vector<8x128xf32>
    %53 = arith.subf %50, %52 : vector<8x128xf32>
    %54 = arith.mulf %53, %53 : vector<8x128xf32>
    %55 = arith.addf %48, %54 : vector<8x128xf32>
    %c4 = arith.constant 4 : index
    %c0_37 = arith.constant 0 : index
    %c0_38 = arith.constant 0 : index
    %56 = vector.load %arg5[%c4, %c0_37, %c0_38] : memref<8x8x128xf32, #tpu.memory_space<vmem>>, vector<1x8x128xf32>
    %57 = vector.shape_cast %56 : vector<1x8x128xf32> to vector<8x128xf32>
    %c4_39 = arith.constant 4 : index
    %c0_40 = arith.constant 0 : index
    %c0_41 = arith.constant 0 : index
    %58 = vector.load %arg6[%c4_39, %c0_40, %c0_41] : memref<8x8x128xf32, #tpu.memory_space<vmem>>, vector<1x8x128xf32>
    %59 = vector.shape_cast %58 : vector<1x8x128xf32> to vector<8x128xf32>
    %60 = arith.subf %57, %59 : vector<8x128xf32>
    %61 = arith.mulf %60, %60 : vector<8x128xf32>
    %62 = arith.addf %55, %61 : vector<8x128xf32>
    %c5 = arith.constant 5 : index
    %c0_42 = arith.constant 0 : index
    %c0_43 = arith.constant 0 : index
    %63 = vector.load %arg5[%c5, %c0_42, %c0_43] : memref<8x8x128xf32, #tpu.memory_space<vmem>>, vector<1x8x128xf32>
    %64 = vector.shape_cast %63 : vector<1x8x128xf32> to vector<8x128xf32>
    %c5_44 = arith.constant 5 : index
    %c0_45 = arith.constant 0 : index
    %c0_46 = arith.constant 0 : index
    %65 = vector.load %arg6[%c5_44, %c0_45, %c0_46] : memref<8x8x128xf32, #tpu.memory_space<vmem>>, vector<1x8x128xf32>
    %66 = vector.shape_cast %65 : vector<1x8x128xf32> to vector<8x128xf32>
    %67 = arith.subf %64, %66 : vector<8x128xf32>
    %68 = arith.mulf %67, %67 : vector<8x128xf32>
    %69 = arith.addf %62, %68 : vector<8x128xf32>
    %c6 = arith.constant 6 : index
    %c0_47 = arith.constant 0 : index
    %c0_48 = arith.constant 0 : index
    %70 = vector.load %arg5[%c6, %c0_47, %c0_48] : memref<8x8x128xf32, #tpu.memory_space<vmem>>, vector<1x8x128xf32>
    %71 = vector.shape_cast %70 : vector<1x8x128xf32> to vector<8x128xf32>
    %c6_49 = arith.constant 6 : index
    %c0_50 = arith.constant 0 : index
    %c0_51 = arith.constant 0 : index
    %72 = vector.load %arg6[%c6_49, %c0_50, %c0_51] : memref<8x8x128xf32, #tpu.memory_space<vmem>>, vector<1x8x128xf32>
    %73 = vector.shape_cast %72 : vector<1x8x128xf32> to vector<8x128xf32>
    %74 = arith.subf %71, %73 : vector<8x128xf32>
    %75 = arith.mulf %74, %74 : vector<8x128xf32>
    %76 = arith.addf %69, %75 : vector<8x128xf32>
    %c7 = arith.constant 7 : index
    %c0_52 = arith.constant 0 : index
    %c0_53 = arith.constant 0 : index
    %77 = vector.load %arg5[%c7, %c0_52, %c0_53] : memref<8x8x128xf32, #tpu.memory_space<vmem>>, vector<1x8x128xf32>
    %78 = vector.shape_cast %77 : vector<1x8x128xf32> to vector<8x128xf32>
    %c7_54 = arith.constant 7 : index
    %c0_55 = arith.constant 0 : index
    %c0_56 = arith.constant 0 : index
    %79 = vector.load %arg6[%c7_54, %c0_55, %c0_56] : memref<8x8x128xf32, #tpu.memory_space<vmem>>, vector<1x8x128xf32>
    %80 = vector.shape_cast %79 : vector<1x8x128xf32> to vector<8x128xf32>
    %81 = arith.subf %78, %80 : vector<8x128xf32>
    %82 = arith.mulf %81, %81 : vector<8x128xf32>
    %83 = arith.addf %76, %82 : vector<8x128xf32>
    %c0_57 = arith.constant 0 : index
    %84 = memref.load %arg1[%c0_57] : memref<8xf32, #tpu.memory_space<smem>>
    %c1_58 = arith.constant 1 : index
    %85 = memref.load %arg1[%c1_58] : memref<8xf32, #tpu.memory_space<smem>>
    %c2_59 = arith.constant 2 : index
    %86 = memref.load %arg1[%c2_59] : memref<8xf32, #tpu.memory_space<smem>>
    %c3_60 = arith.constant 3 : index
    %87 = memref.load %arg1[%c3_60] : memref<8xf32, #tpu.memory_space<smem>>
    %c4_61 = arith.constant 4 : index
    %88 = memref.load %arg1[%c4_61] : memref<8xf32, #tpu.memory_space<smem>>
    %c5_62 = arith.constant 5 : index
    %89 = memref.load %arg1[%c5_62] : memref<8xf32, #tpu.memory_space<smem>>
    %c6_63 = arith.constant 6 : index
    %90 = memref.load %arg1[%c6_63] : memref<8xf32, #tpu.memory_space<smem>>
    %c7_64 = arith.constant 7 : index
    %91 = memref.load %arg1[%c7_64] : memref<8xf32, #tpu.memory_space<smem>>
    %c0_65 = arith.constant 0 : index
    %c0_66 = arith.constant 0 : index
    %c0_67 = arith.constant 0 : index
    %92 = vector.load %arg5[%c0_65, %c0_66, %c0_67] : memref<8x8x128xf32, #tpu.memory_space<vmem>>, vector<1x8x128xf32>
    %93 = vector.shape_cast %92 : vector<1x8x128xf32> to vector<8x128xf32>
    %94 = vector.broadcast %88 : f32 to vector<8x128xf32>
    %95 = arith.mulf %93, %94 : vector<8x128xf32>
    %96 = vector.broadcast %84 : f32 to vector<8x128xf32>
    %97 = arith.addf %95, %96 : vector<8x128xf32>
    %c1_68 = arith.constant 1 : index
    %c0_69 = arith.constant 0 : index
    %c0_70 = arith.constant 0 : index
    %98 = vector.load %arg5[%c1_68, %c0_69, %c0_70] : memref<8x8x128xf32, #tpu.memory_space<vmem>>, vector<1x8x128xf32>
    %99 = vector.shape_cast %98 : vector<1x8x128xf32> to vector<8x128xf32>
    %100 = vector.broadcast %89 : f32 to vector<8x128xf32>
    %101 = arith.mulf %99, %100 : vector<8x128xf32>
    %102 = vector.broadcast %85 : f32 to vector<8x128xf32>
    %103 = arith.addf %101, %102 : vector<8x128xf32>
    %c2_71 = arith.constant 2 : index
    %c0_72 = arith.constant 0 : index
    %c0_73 = arith.constant 0 : index
    %104 = vector.load %arg5[%c2_71, %c0_72, %c0_73] : memref<8x8x128xf32, #tpu.memory_space<vmem>>, vector<1x8x128xf32>
    %105 = vector.shape_cast %104 : vector<1x8x128xf32> to vector<8x128xf32>
    %106 = vector.broadcast %90 : f32 to vector<8x128xf32>
    %107 = arith.mulf %105, %106 : vector<8x128xf32>
    %108 = vector.broadcast %86 : f32 to vector<8x128xf32>
    %109 = arith.addf %107, %108 : vector<8x128xf32>
    %c3_74 = arith.constant 3 : index
    %c0_75 = arith.constant 0 : index
    %c0_76 = arith.constant 0 : index
    %110 = vector.load %arg5[%c3_74, %c0_75, %c0_76] : memref<8x8x128xf32, #tpu.memory_space<vmem>>, vector<1x8x128xf32>
    %111 = vector.shape_cast %110 : vector<1x8x128xf32> to vector<8x128xf32>
    %112 = vector.broadcast %91 : f32 to vector<8x128xf32>
    %113 = arith.mulf %111, %112 : vector<8x128xf32>
    %114 = vector.broadcast %87 : f32 to vector<8x128xf32>
    %115 = arith.addf %113, %114 : vector<8x128xf32>
    %c3_77 = arith.constant 3 : index
    %c0_78 = arith.constant 0 : index
    %c0_79 = arith.constant 0 : index
    %116 = vector.load %arg6[%c3_77, %c0_78, %c0_79] : memref<8x8x128xf32, #tpu.memory_space<vmem>>, vector<1x8x128xf32>
    %117 = vector.shape_cast %116 : vector<1x8x128xf32> to vector<8x128xf32>
    %118 = vector.broadcast %91 : f32 to vector<8x128xf32>
    %119 = arith.mulf %117, %118 : vector<8x128xf32>
    %120 = vector.broadcast %87 : f32 to vector<8x128xf32>
    %121 = arith.addf %119, %120 : vector<8x128xf32>
    %cst_80 = arith.constant 1.470000e+00 : f32
    %122 = vector.broadcast %cst_80 : f32 to vector<8x128xf32>
    %123 = arith.mulf %97, %122 : vector<8x128xf32>
    %124 = tpu.reciprocal %103 {approx = true} : vector<8x128xf32> -> vector<8x128xf32>
    %125 = arith.mulf %123, %124 : vector<8x128xf32>
    %126 = arith.subf %125, %121 : vector<8x128xf32>
    %cst_81 = arith.constant 2.500000e-01 : f32
    %127 = vector.broadcast %cst_81 : f32 to vector<8x128xf32>
    %128 = arith.subf %115, %127 : vector<8x128xf32>
    %cst_82 = arith.constant 171216.5 : f32
    %129 = vector.broadcast %cst_82 : f32 to vector<8x128xf32>
    %130 = arith.mulf %128, %129 : vector<8x128xf32>
    %cst_83 = arith.constant -49427.9883 : f32
    %131 = vector.broadcast %cst_83 : f32 to vector<8x128xf32>
    %132 = arith.addf %130, %131 : vector<8x128xf32>
    %133 = arith.mulf %132, %128 : vector<8x128xf32>
    %cst_84 = arith.constant 14554.6055 : f32
    %134 = vector.broadcast %cst_84 : f32 to vector<8x128xf32>
    %135 = arith.addf %133, %134 : vector<8x128xf32>
    %136 = arith.mulf %135, %128 : vector<8x128xf32>
    %cst_85 = arith.constant -4395.65234 : f32
    %137 = vector.broadcast %cst_85 : f32 to vector<8x128xf32>
    %138 = arith.addf %136, %137 : vector<8x128xf32>
    %139 = arith.mulf %138, %128 : vector<8x128xf32>
    %cst_86 = arith.constant 1372.7926 : f32
    %140 = vector.broadcast %cst_86 : f32 to vector<8x128xf32>
    %141 = arith.addf %139, %140 : vector<8x128xf32>
    %142 = arith.mulf %141, %128 : vector<8x128xf32>
    %cst_87 = arith.constant -449.148468 : f32
    %143 = vector.broadcast %cst_87 : f32 to vector<8x128xf32>
    %144 = arith.addf %142, %143 : vector<8x128xf32>
    %145 = arith.mulf %144, %128 : vector<8x128xf32>
    %cst_88 = arith.constant 157.448349 : f32
    %146 = vector.broadcast %cst_88 : f32 to vector<8x128xf32>
    %147 = arith.addf %145, %146 : vector<8x128xf32>
    %148 = arith.mulf %147, %128 : vector<8x128xf32>
    %cst_89 = arith.constant -61.816494 : f32
    %149 = vector.broadcast %cst_89 : f32 to vector<8x128xf32>
    %150 = arith.addf %148, %149 : vector<8x128xf32>
    %151 = arith.mulf %150, %128 : vector<8x128xf32>
    %cst_90 = arith.constant 30.3375568 : f32
    %152 = vector.broadcast %cst_90 : f32 to vector<8x128xf32>
    %153 = arith.addf %151, %152 : vector<8x128xf32>
    %154 = arith.mulf %153, %128 : vector<8x128xf32>
    %cst_91 = arith.constant -29.7774067 : f32
    %155 = vector.broadcast %cst_91 : f32 to vector<8x128xf32>
    %156 = arith.addf %154, %155 : vector<8x128xf32>
    %157 = arith.mulf %156, %128 : vector<8x128xf32>
    %cst_92 = arith.constant 3.38881254 : f32
    %158 = vector.broadcast %cst_92 : f32 to vector<8x128xf32>
    %159 = arith.addf %157, %158 : vector<8x128xf32>
    %160 = arith.subf %159, %109 : vector<8x128xf32>
    %c0_93 = arith.constant 0 : index
    %c0_94 = arith.constant 0 : index
    %161 = vector.load %arg9[%c0_93, %c0_94] : memref<8x128xf32, #tpu.memory_space<vmem>>, vector<8x128xf32>
    %162 = arith.mulf %126, %126 : vector<8x128xf32>
    %163 = arith.mulf %160, %160 : vector<8x128xf32>
    %cst_95 = arith.constant 1.000000e-01 : f32
    %164 = vector.broadcast %cst_95 : f32 to vector<8x128xf32>
    %165 = arith.mulf %164, %163 : vector<8x128xf32>
    %166 = arith.addf %162, %165 : vector<8x128xf32>
    %cst_96 = arith.constant 4.000000e-04 : f32
    %167 = vector.broadcast %cst_96 : f32 to vector<8x128xf32>
    %168 = arith.mulf %167, %166 : vector<8x128xf32>
    %cst_97 = arith.constant 5.000000e-03 : f32
    %169 = vector.broadcast %cst_97 : f32 to vector<8x128xf32>
    %170 = arith.mulf %169, %83 : vector<8x128xf32>
    %171 = arith.addf %168, %170 : vector<8x128xf32>
    %172 = arith.addf %161, %171 : vector<8x128xf32>
    %c0_98 = arith.constant 0 : index
    %c0_99 = arith.constant 0 : index
    %173 = vector.load %arg9[%c0_98, %c0_99] : memref<8x128xf32, #tpu.memory_space<vmem>>, vector<8x128xf32>
    tpu.vector_store %arg9[%c0_98, %c0_99], %172 {strides = array<i32>} : memref<8x128xf32, #tpu.memory_space<vmem>>, vector<8x128xf32>,
    %c2_i32 = arith.constant 2 : i32
    %174 = arith.cmpi eq, %arg0, %c2_i32 : i32
    %175 = arith.extui %174 : i1 to i32
    %c0_i32_100 = arith.constant 0 : i32
    %176 = arith.cmpi ne, %175, %c0_i32_100 : i32
    scf.if %176 {
      %c0_101 = arith.constant 0 : index
      %c0_102 = arith.constant 0 : index
      %177 = vector.load %arg8[%c0_101, %c0_102] : memref<5x1024xf32, #tpu.memory_space<vmem>>, vector<5x1024xf32>
      %178 = vector.shape_cast %177 : vector<5x1024xf32> to vector<1x5x1024xf32>
      %cst_103 = arith.constant dense<0.000000e+00> : vector<1xf32>
      %179 = vector.multi_reduction <add>, %178, %cst_103 [1, 2] : vector<1x5x1024xf32> to vector<1xf32>
      %180 = vector.shape_cast %179 : vector<1xf32> to vector<1x1x1xf32>
      %181 = vector.extract %180[0, 0, 0] : f32 from vector<1x1x1xf32>
      %c0_104 = arith.constant 0 : index
      %c0_105 = arith.constant 0 : index
      %182 = vector.load %arg9[%c0_104, %c0_105] : memref<8x128xf32, #tpu.memory_space<vmem>>, vector<8x128xf32>
      %183 = vector.shape_cast %182 : vector<8x128xf32> to vector<1x8x128xf32>
      %cst_106 = arith.constant dense<0.000000e+00> : vector<1xf32>
      %184 = vector.multi_reduction <add>, %183, %cst_106 [1, 2] : vector<1x8x128xf32> to vector<1xf32>
      %185 = vector.shape_cast %184 : vector<1xf32> to vector<1x1x1xf32>
      %186 = vector.extract %185[0, 0, 0] : f32 from vector<1x1x1xf32>
      %187 = arith.addf %181, %186 : f32
      %c0_107 = arith.constant 0 : index
      %188 = memref.load %arg7[%c0_107] : memref<1xf32, #tpu.memory_space<smem>>
      memref.store %187, %arg7[%c0_107] : memref<1xf32, #tpu.memory_space<smem>>
    } else {
    }
    return
  }
  func.func @transform_0(%arg0: i32) -> i32 {
    %c0_i32 = arith.constant 0 : i32
    %c0_i32_0 = arith.constant 0 : i32
    return %c0_i32 : i32
  }
  func.func @transform_1(%arg0: i32) -> (i32, i32) {
    %c0_i32 = arith.constant 0 : i32
    %c0_i32_0 = arith.constant 0 : i32
    %c0_i32_1 = arith.constant 0 : i32
    return %c0_i32, %c0_i32_0 : i32, i32
  }
  func.func @transform_2(%arg0: i32) -> (i32, i32) {
    %c0_i32 = arith.constant 0 : i32
    %c0_i32_0 = arith.constant 0 : i32
    return %c0_i32, %arg0 : i32, i32
  }
  func.func @transform_3(%arg0: i32) -> (i32, i32) {
    %c0_i32 = arith.constant 0 : i32
    %c0_i32_0 = arith.constant 0 : i32
    return %c0_i32, %arg0 : i32, i32
  }
  func.func @transform_4(%arg0: i32) -> (i32, i32, i32) {
    %c0_i32 = arith.constant 0 : i32
    %c0_i32_0 = arith.constant 0 : i32
    %c0_i32_1 = arith.constant 0 : i32
    return %c0_i32, %c0_i32_0, %arg0 : i32, i32, i32
  }
  func.func @transform_5(%arg0: i32) -> (i32, i32, i32) {
    %c0_i32 = arith.constant 0 : i32
    %c0_i32_0 = arith.constant 0 : i32
    %c0_i32_1 = arith.constant 0 : i32
    return %c0_i32, %c0_i32_0, %arg0 : i32, i32, i32
  }
  func.func @transform_6(%arg0: i32) -> i32 {
    %c0_i32 = arith.constant 0 : i32
    %c0_i32_0 = arith.constant 0 : i32
    return %c0_i32 : i32
  }
}

</mosaic_0001>

<llo_original>
// kernel: tpu_custom_call.1
$region0: #{tpu_custom_call.1}
  #allocation0 [shape = 'u32[]', space=smem, size = 0x4, offset = 0x4, fixed_abs, tag = 'smem constant byte address 0x4 - core index']
  #allocation1 [shape = 'u32[144,128]{1,0:T(1,128)}', space=vmem, size = 0x12000, scoped, tag = 'internal scratch']
  #allocation2 [shape = 'f32[5,1024]{1,0:T(8,128)}', space=vmem, size = 0x8000, scoped, tag = 'scratch operand']
  #allocation3 [shape = 'f32[8,128]{1,0:T(8,128)}', space=vmem, size = 0x1000, scoped, tag = 'scratch operand']
  %s0 = inlined_call_operand.vmem [shape: f32[8], index: 0, kind: input, shape index: {}]
  %s1 = inlined_call_operand.vmem [shape: f32[5,3], index: 1, kind: input, shape index: {}]
  %s2 = inlined_call_operand.hbm [shape: f32[5,3072], index: 2, kind: input, shape index: {}]
  %s3 = inlined_call_operand.hbm [shape: f32[5,3072], index: 3, kind: input, shape index: {}]
  %s4 = inlined_call_operand.hbm [shape: f32[8,8,384], index: 4, kind: input, shape index: {}]
  %s5 = inlined_call_operand.hbm [shape: f32[8,8,384], index: 5, kind: input, shape index: {}]
  %s6 = inlined_call_operand.hbm [shape: f32[1], index: 6, kind: output, shape index: {}]
  %s7 = sld [smem:[#allocation0]]
  $region85: #{tpu_custom_call.1} parent=0
    _
  %s9 = ssub.s32 1, %s7
  %s10 = scalar_select 0, %s9, %s7
  $region1: #{tpu_custom_call.1} parent=0
    #allocation4 [shape = 'u8[512]{0}', space=smem, size = 0x200, scoped, tag = 'input window, operand 0, single buffered']
    #allocation5 [shape = 's32[2]{0}', space=sflag, size = 0x8, scoped, tag = 'scoped memory for tpu_custom_call.1']
    #allocation6 [shape = 's32[2]{0}', space=sflag, size = 0x8, scoped, tag = 'scoped memory for tpu_custom_call.1']
    #allocation7 [shape = 's32[2]{0}', space=sflag, size = 0x8, scoped, tag = 'scoped memory for tpu_custom_call.1']
    #allocation8 [shape = 'u8[65536]{0}', space=vmem, size = 0x10000, scoped, tag = 'input window, operand 2']
    #allocation9 [shape = 'u8[65536]{0}', space=vmem, size = 0x10000, scoped, tag = 'input window, operand 3']
    #allocation10 [shape = 's32[2]{0}', space=sflag, size = 0x8, scoped, tag = 'scoped memory for tpu_custom_call.1']
    #allocation11 [shape = 'u8[65536]{0}', space=vmem, size = 0x10000, scoped, tag = 'input window, operand 4']
    #allocation12 [shape = 'u8[65536]{0}', space=vmem, size = 0x10000, scoped, tag = 'input window, operand 5']
    #allocation13 [shape = 's32[2]{0}', space=sflag, size = 0x8, scoped, tag = 'scoped memory for tpu_custom_call.1']
    #allocation14 [shape = 'u8[512]{0}', space=smem, size = 0x200, scoped, tag = 'output window, operand 0, single buffered']
    %11 = vsyncpa [#allocation7], 0
    %12 = vsyncpa [#allocation5], 0
    %s13 = scalar_lea.sflag [#allocation5], 1
    %14 = vsyncpa %s13, 0
    %15 = vsyncpa [#allocation10], 0
    %s16 = scalar_lea.sflag [#allocation10], 1
    %17 = vsyncpa %s16, 0
    %18 = vsyncpa [#allocation13], 0
    %s19 = scalar_lea.sflag [#allocation13], 1
    %20 = vsyncpa %s19, 0
    %21 = vsyncpa [#allocation6], 0
    loop: start=0, step=1, limit=5
    $region2: #{tpu_custom_call.1} parent=1 // loop_pre_header
      _
    $region3: #{tpu_custom_call.1} parent=1 // loop_header
      %s23 = sphi 0, %s27
      %p24 = scmp.ge.s32.totalorder %s23, 5
      %s31 = sphi 0, %s31
      %s33 = sphi 0, %s31
      %s34 = sphi 0, %s33
      %s48 = sphi 0, %s34
      %s52 = sphi 0, %s52
      %s54 = sphi 0, %s52
      %s55 = sphi 0, %s54
      %s69 = sphi 0, %s55
      %s75 = sphi 0, %s77
      %s78 = sphi 0, %s75
      %s79 = sphi 0, %s78
      %s95 = sphi 0, %s79
      %s101 = sphi 0, %s103
      %s104 = sphi 0, %s101
      %s105 = sphi 0, %s104
      %s121 = sphi 0, %s105
      %s127 = sphi 0, %s129
      %s130 = sphi 0, %s127
      %s131 = sphi 0, %s130
      %s147 = sphi 0, %s131
      %s153 = sphi 0, %s155
      %s156 = sphi 0, %s153
      %s157 = sphi 0, %s156
      %s173 = sphi 0, %s157
      %s177 = sphi 0, %s177
      %s179 = sphi 0, %s177
      %s180 = sphi 0, %s179
      %s194 = sphi 0, %s180
    $region4: #{tpu_custom_call.1} parent=1 // loop_header_branch
      %26 = sbr.rel (%p24) target = $region8
    $region5: #{tpu_custom_call.1} parent=1 // loop_body
      %s28 = ssub.s32 %s23, 1
      %s29 = ssub.s32 %s23, 2
      %s30 = sadd.s32 %s23, 1
      %s32 = sadd.s32 %s31, 1
      %p35 = scmp.eq.s32.totalorder %s23, 2
      %p36 = scmp.ne.s32.totalorder %s31, %s33
      %p37 = scmp.eq.s32.totalorder %s23, 0
      %p38 = por %p36, %p37
      %p39 = scmp.ne.s32.totalorder %s31, %s33
      %p40 = scmp.eq.s32.totalorder %s28, 2
      %p41 = por %p39, %p40
      %p42 = scmp.ne.s32.totalorder %s33, %s34
      %p43 = scmp.eq.s32.totalorder %s28, 0
      %p44 = por %p42, %p43
      %p45 = scmp.ne.s32.totalorder %s33, %s34
      %p46 = scmp.eq.s32.totalorder %s29, 2
      %p47 = por %p45, %p46
      %p49 = scmp.ne.s32.totalorder %s34, %s48
      %p50 = scmp.eq.s32.totalorder %s29, 0
      %p51 = por %p49, %p50
      %s53 = sadd.s32 %s52, 1
      %p56 = scmp.eq.s32.totalorder %s23, 2
      %p57 = scmp.ne.s32.totalorder %s52, %s54
      %p58 = scmp.eq.s32.totalorder %s23, 0
      %p59 = por %p57, %p58
      %p60 = scmp.ne.s32.totalorder %s52, %s54
      %p61 = scmp.eq.s32.totalorder %s28, 2
      %p62 = por %p60, %p61
      %p63 = scmp.ne.s32.totalorder %s54, %s55
      %p64 = scmp.eq.s32.totalorder %s28, 0
      %p65 = por %p63, %p64
      %p66 = scmp.ne.s32.totalorder %s54, %s55
      %p67 = scmp.eq.s32.totalorder %s29, 2
      %p68 = por %p66, %p67
      %p70 = scmp.ne.s32.totalorder %s55, %s69
      %p71 = scmp.eq.s32.totalorder %s29, 0
      %p72 = por %p70, %p71
      %s73 = ssub.s32 %s23, %s30
      %p74 = scmp.eq.s32.totalorder %s73, 0
      %s76 = sadd.s32 %s75, 1
      %s77 = scalar_select %p74, %s75, %s76
      %p80 = pneg %p74
      %p81 = scmp.eq.s32.totalorder %s23, 2
      %p82 = por %p80, %p81
      %p83 = scmp.ne.s32.totalorder %s75, %s78
      %p84 = scmp.eq.s32.totalorder %s23, 0
      %p85 = por %p83, %p84
      %p86 = scmp.ne.s32.totalorder %s75, %s78
      %p87 = scmp.eq.s32.totalorder %s28, 2
      %p88 = por %p86, %p87
      %p89 = scmp.ne.s32.totalorder %s78, %s79
      %p90 = scmp.eq.s32.totalorder %s28, 0
      %p91 = por %p89, %p90
      %p92 = scmp.ne.s32.totalorder %s78, %s79
      %p93 = scmp.eq.s32.totalorder %s29, 2
      %p94 = por %p92, %p93
      %p96 = scmp.ne.s32.totalorder %s79, %s95
      %p97 = scmp.eq.s32.totalorder %s29, 0
      %p98 = por %p96, %p97
      %s99 = ssub.s32 %s23, %s30
      %p100 = scmp.eq.s32.totalorder %s99, 0
      %s102 = sadd.s32 %s101, 1
      %s103 = scalar_select %p100, %s101, %s102
      %p106 = pneg %p100
      %p107 = scmp.eq.s32.totalorder %s23, 2
      %p108 = por %p106, %p107
      %p109 = scmp.ne.s32.totalorder %s101, %s104
      %p110 = scmp.eq.s32.totalorder %s23, 0
      %p111 = por %p109, %p110
      %p112 = scmp.ne.s32.totalorder %s101, %s104
      %p113 = scmp.eq.s32.totalorder %s28, 2
      %p114 = por %p112, %p113
      %p115 = scmp.ne.s32.totalorder %s104, %s105
      %p116 = scmp.eq.s32.totalorder %s28, 0
      %p117 = por %p115, %p116
      %p118 = scmp.ne.s32.totalorder %s104, %s105
      %p119 = scmp.eq.s32.totalorder %s29, 2
      %p120 = por %p118, %p119
      %p122 = scmp.ne.s32.totalorder %s105, %s121
      %p123 = scmp.eq.s32.totalorder %s29, 0
      %p124 = por %p122, %p123
      %s125 = ssub.s32 %s23, %s30
      %p126 = scmp.eq.s32.totalorder %s125, 0
      %s128 = sadd.s32 %s127, 1
      %s129 = scalar_select %p126, %s127, %s128
      %p132 = pneg %p126
      %p133 = scmp.eq.s32.totalorder %s23, 2
      %p134 = por %p132, %p133
      %p135 = scmp.ne.s32.totalorder %s127, %s130
      %p136 = scmp.eq.s32.totalorder %s23, 0
      %p137 = por %p135, %p136
      %p138 = scmp.ne.s32.totalorder %s127, %s130
      %p139 = scmp.eq.s32.totalorder %s28, 2
      %p140 = por %p138, %p139
      %p141 = scmp.ne.s32.totalorder %s130, %s131
      %p142 = scmp.eq.s32.totalorder %s28, 0
      %p143 = por %p141, %p142
      %p144 = scmp.ne.s32.totalorder %s130, %s131
      %p145 = scmp.eq.s32.totalorder %s29, 2
      %p146 = por %p144, %p145
      %p148 = scmp.ne.s32.totalorder %s131, %s147
      %p149 = scmp.eq.s32.totalorder %s29, 0
      %p150 = por %p148, %p149
      %s151 = ssub.s32 %s23, %s30
      %p152 = scmp.eq.s32.totalorder %s151, 0
      %s154 = sadd.s32 %s153, 1
      %s155 = scalar_select %p152, %s153, %s154
      %p158 = pneg %p152
      %p159 = scmp.eq.s32.totalorder %s23, 2
      %p160 = por %p158, %p159
      %p161 = scmp.ne.s32.totalorder %s153, %s156
      %p162 = scmp.eq.s32.totalorder %s23, 0
      %p163 = por %p161, %p162
      %p164 = scmp.ne.s32.totalorder %s153, %s156
      %p165 = scmp.eq.s32.totalorder %s28, 2
      %p166 = por %p164, %p165
      %p167 = scmp.ne.s32.totalorder %s156, %s157
      %p168 = scmp.eq.s32.totalorder %s28, 0
      %p169 = por %p167, %p168
      %p170 = scmp.ne.s32.totalorder %s156, %s157
      %p171 = scmp.eq.s32.totalorder %s29, 2
      %p172 = por %p170, %p171
      %p174 = scmp.ne.s32.totalorder %s157, %s173
      %p175 = scmp.eq.s32.totalorder %s29, 0
      %p176 = por %p174, %p175
      %s178 = sadd.s32 %s177, 1
      %p181 = scmp.eq.s32.totalorder %s23, 2
      %p182 = scmp.ne.s32.totalorder %s177, %s179
      %p183 = scmp.eq.s32.totalorder %s23, 0
      %p184 = por %p182, %p183
      %p185 = scmp.ne.s32.totalorder %s177, %s179
      %p186 = scmp.eq.s32.totalorder %s28, 2
      %p187 = por %p185, %p186
      %p188 = scmp.ne.s32.totalorder %s179, %s180
      %p189 = scmp.eq.s32.totalorder %s28, 0
      %p190 = por %p188, %p189
      %p191 = scmp.ne.s32.totalorder %s179, %s180
      %p192 = scmp.eq.s32.totalorder %s29, 2
      %p193 = por %p191, %p192
      %p195 = scmp.ne.s32.totalorder %s180, %s194
      %p196 = scmp.eq.s32.totalorder %s29, 0
      %p197 = por %p195, %p196
      %p198 = scmp.le.s32.totalorder 1, %s23
      %p199 = scmp.lt.s32.totalorder %s23, 4
      %p200 = pnand %p198, %p199
      %p201 = pneg %p200
      // Predicated region
      $region9: #{tpu_custom_call.1} parent=5 // pred_check
        _
      $region10: #{tpu_custom_call.1} parent=5 // pred_check_branch
        %203 = sbr.rel (%p200) target = $region12
      $region11: #{tpu_custom_call.1} parent=5 // pred_region
        %s204 = ssub.s32 %s23, 1
        // Predicated region
        $region13: #{tpu_custom_call.1} parent=11 // pred_check
          %p205 = pneg %p44
        $region14: #{tpu_custom_call.1} parent=11 // pred_check_branch
          %207 = sbr.rel (%p205) target = $region16
        $region15: #{tpu_custom_call.1} parent=11 // pred_region
          %s209 = ssub.s32 16, 16
          %210 = vsyncadd [#allocation7], %s209
          %s212 = sshll.u32 %s0, 4
          %s213 = int_to_ptr.vmem [resolvable:$true] %s212
          %215 = dma.vmem_to_smem %s213, 16, [#allocation4], [#allocation7]
        $region16: #{tpu_custom_call.1} parent=11 // pred_fallthru
          _
        // Predicated region
        $region17: #{tpu_custom_call.1} parent=11 // pred_check
          %p216 = pneg %p65
        $region18: #{tpu_custom_call.1} parent=11 // pred_check_branch
          %218 = sbr.rel (%p216) target = $region20
        $region19: #{tpu_custom_call.1} parent=11 // pred_region
          _
        $region20: #{tpu_custom_call.1} parent=11 // pred_fallthru
          _
      $region12: #{tpu_custom_call.1} parent=5 // pred_fallthru
        _
      %p219 = scmp.lt.s32.totalorder %s23, 3
      // Predicated region
      $region21: #{tpu_custom_call.1} parent=5 // pred_check
        %p220 = pneg %p219
      $region22: #{tpu_custom_call.1} parent=5 // pred_check_branch
        %222 = sbr.rel (%p220) target = $region24
      $region23: #{tpu_custom_call.1} parent=5 // pred_region
        // Predicated region
        $region25: #{tpu_custom_call.1} parent=23 // pred_check
          %p223 = pneg %p85
        $region26: #{tpu_custom_call.1} parent=23 // pred_check_branch
          %225 = sbr.rel (%p223) target = $region28
        $region27: #{tpu_custom_call.1} parent=23 // pred_region
          %s226 = sand.u32 %s75, 1
          %s227 = scalar_lea.sflag [#allocation5], %s226
          %s228 = sand.u32 %s75, 1
          %s229 = smul.addr %s228, 64
          %s230 = scalar_lea.vmem [#allocation8], %s229
          %s231 = smul.u32 8, %s23
          %s233 = ssub.s32 1024, 1024
          %234 = vsyncadd %s227, %s233
          %s235 = smul.addr %s231, 128
          %s236 = scalar_lea.hbm %s2, %s235
          %s238 = sshll.u32 %s230, 4
          %s239 = int_to_ptr.vmem [resolvable:$true] %s238
          %241 = dma.hbm_to_vmem [thread:$0]  %s236, 1024, %s239, %s227
        $region28: #{tpu_custom_call.1} parent=23 // pred_fallthru
          _
        // Predicated region
        $region29: #{tpu_custom_call.1} parent=23 // pred_check
          %p242 = pneg %p111
        $region30: #{tpu_custom_call.1} parent=23 // pred_check_branch
          %244 = sbr.rel (%p242) target = $region32
        $region31: #{tpu_custom_call.1} parent=23 // pred_region
          %s245 = sand.u32 %s23, 1
          %s246 = scalar_lea.sflag [#allocation10], %s245
          %s247 = sand.u32 %s101, 1
          %s248 = smul.addr %s247, 64
          %s249 = scalar_lea.vmem [#allocation9], %s248
          %s250 = smul.u32 8, %s23
          %s252 = ssub.s32 1024, 1024
          %253 = vsyncadd %s246, %s252
          %s254 = smul.addr %s250, 128
          %s255 = scalar_lea.hbm %s3, %s254
          %s257 = sshll.u32 %s249, 4
          %s258 = int_to_ptr.vmem [resolvable:$true] %s257
          %260 = dma.hbm_to_vmem [thread:$0]  %s255, 1024, %s258, %s246
        $region32: #{tpu_custom_call.1} parent=23 // pred_fallthru
          _
        // Predicated region
        $region33: #{tpu_custom_call.1} parent=23 // pred_check
          %p261 = pneg %p137
        $region34: #{tpu_custom_call.1} parent=23 // pred_check_branch
          %263 = sbr.rel (%p261) target = $region36
        $region35: #{tpu_custom_call.1} parent=23 // pred_region
          %s264 = sand.u32 %s23, 1
          %s265 = scalar_lea.sflag [#allocation10], %s264
          %s266 = sand.u32 %s127, 1
          %s267 = smul.addr %s266, 64
          %s268 = scalar_lea.vmem [#allocation11], %s267
          %s270 = ssub.s32 1024, 1024
          %271 = vsyncadd %s265, %s270
          %s272 = smul.addr %s23, 128
          %s273 = scalar_lea.hbm %s4, %s272
          %s274 = sshll.u32 %s268, 4
          %s275 = int_to_ptr.vmem [resolvable:$true] %s274
          %280 = dma.hbm_to_vmem [thread:$0]  %s273, 1024, %s275, %s265, 384, 128, 8
        $region36: #{tpu_custom_call.1} parent=23 // pred_fallthru
          _
        // Predicated region
        $region37: #{tpu_custom_call.1} parent=23 // pred_check
          %p281 = pneg %p163
        $region38: #{tpu_custom_call.1} parent=23 // pred_check_branch
          %283 = sbr.rel (%p281) target = $region40
        $region39: #{tpu_custom_call.1} parent=23 // pred_region
          %s284 = sand.u32 %s153, 1
          %s285 = scalar_lea.sflag [#allocation13], %s284
          %s286 = sand.u32 %s153, 1
          %s287 = smul.addr %s286, 64
          %s288 = scalar_lea.vmem [#allocation12], %s287
          %s290 = ssub.s32 1024, 1024
          %291 = vsyncadd %s285, %s290
          %s292 = smul.addr %s23, 128
          %s293 = scalar_lea.hbm %s5, %s292
          %s294 = sshll.u32 %s288, 4
          %s295 = int_to_ptr.vmem [resolvable:$true] %s294
          %300 = dma.hbm_to_vmem [thread:$0]  %s293, 1024, %s295, %s285, 384, 128, 8
        $region40: #{tpu_custom_call.1} parent=23 // pred_fallthru
          _
      $region24: #{tpu_custom_call.1} parent=5 // pred_fallthru
        _
      %p301 = scmp.le.s32.totalorder 1, %s23
      %p302 = scmp.lt.s32.totalorder %s23, 4
      %p303 = pnand %p301, %p302
      %p304 = pneg %p303
      // Predicated region
      $region41: #{tpu_custom_call.1} parent=5 // pred_check
        _
      $region42: #{tpu_custom_call.1} parent=5 // pred_check_branch
        %306 = sbr.rel (%p303) target = $region44
      $region43: #{tpu_custom_call.1} parent=5 // pred_region
        %s307 = ssub.s32 %s23, 1
        // Predicated region
        $region45: #{tpu_custom_call.1} parent=43 // pred_check
          %p308 = pneg %p44
        $region46: #{tpu_custom_call.1} parent=43 // pred_check_branch
          %310 = sbr.rel (%p308) target = $region48
        $region47: #{tpu_custom_call.1} parent=43 // pred_region
          %311 = dma.done [#allocation7], 16
        $region48: #{tpu_custom_call.1} parent=43 // pred_fallthru
          _
        %s312 = sand.u32 %s78, 1
        %s313 = scalar_lea.sflag [#allocation5], %s312
        %s314 = sand.u32 %s78, 1
        %s315 = smul.addr %s314, 64
        %s316 = scalar_lea.vmem [#allocation8], %s315
        // Predicated region
        $region49: #{tpu_custom_call.1} parent=43 // pred_check
          %p317 = pneg %p91
        $region50: #{tpu_custom_call.1} parent=43 // pred_check_branch
          %319 = sbr.rel (%p317) target = $region52
        $region51: #{tpu_custom_call.1} parent=43 // pred_region
          %320 = dma.done %s313, 1024
        $region52: #{tpu_custom_call.1} parent=43 // pred_fallthru
          _
        %s321 = sand.u32 %s28, 1
        %s322 = scalar_lea.sflag [#allocation10], %s321
        %s323 = sand.u32 %s104, 1
        %s324 = smul.addr %s323, 64
        %s325 = scalar_lea.vmem [#allocation9], %s324
        // Predicated region
        $region53: #{tpu_custom_call.1} parent=43 // pred_check
          %p326 = pneg %p117
        $region54: #{tpu_custom_call.1} parent=43 // pred_check_branch
          %328 = sbr.rel (%p326) target = $region56
        $region55: #{tpu_custom_call.1} parent=43 // pred_region
          %329 = dma.done %s322, 1024
        $region56: #{tpu_custom_call.1} parent=43 // pred_fallthru
          _
        %s330 = sand.u32 %s28, 1
        %s331 = scalar_lea.sflag [#allocation10], %s330
        %s332 = sand.u32 %s130, 1
        %s333 = smul.addr %s332, 64
        %s334 = scalar_lea.vmem [#allocation11], %s333
        // Predicated region
        $region57: #{tpu_custom_call.1} parent=43 // pred_check
          %p335 = pneg %p143
        $region58: #{tpu_custom_call.1} parent=43 // pred_check_branch
          %337 = sbr.rel (%p335) target = $region60
        $region59: #{tpu_custom_call.1} parent=43 // pred_region
          %338 = dma.done %s331, 1024
        $region60: #{tpu_custom_call.1} parent=43 // pred_fallthru
          _
        %s339 = sand.u32 %s156, 1
        %s340 = scalar_lea.sflag [#allocation13], %s339
        %s341 = sand.u32 %s156, 1
        %s342 = smul.addr %s341, 64
        %s343 = scalar_lea.vmem [#allocation12], %s342
        // Predicated region
        $region61: #{tpu_custom_call.1} parent=43 // pred_check
          %p344 = pneg %p169
        $region62: #{tpu_custom_call.1} parent=43 // pred_check_branch
          %346 = sbr.rel (%p344) target = $region64
        $region63: #{tpu_custom_call.1} parent=43 // pred_region
          %347 = dma.done %s340, 1024
        $region64: #{tpu_custom_call.1} parent=43 // pred_fallthru
          _
        %348 = sfence
        %p349 = pneg %p44
        %p350 = pneg %p41
        %p351 = pneg %p65
        %p352 = pneg %p62
        %s353 = sand.u32 %s78, 1
        %s354 = scalar_lea.sflag [#allocation5], %s353
        %s355 = sand.u32 %s78, 1
        %s356 = smul.addr %s355, 64
        %s357 = scalar_lea.vmem [#allocation8], %s356
        %p358 = pneg %p91
        %p359 = pneg %p88
        %s360 = sand.u32 %s28, 1
        %s361 = scalar_lea.sflag [#allocation10], %s360
        %s362 = sand.u32 %s104, 1
        %s363 = smul.addr %s362, 64
        %s364 = scalar_lea.vmem [#allocation9], %s363
        %p365 = pneg %p117
        %p366 = pneg %p114
        %s367 = sand.u32 %s28, 1
        %s368 = scalar_lea.sflag [#allocation10], %s367
        %s369 = sand.u32 %s130, 1
        %s370 = smul.addr %s369, 64
        %s371 = scalar_lea.vmem [#allocation11], %s370
        %p372 = pneg %p143
        %p373 = pneg %p140
        %s374 = sand.u32 %s156, 1
        %s375 = scalar_lea.sflag [#allocation13], %s374
        %s376 = sand.u32 %s156, 1
        %s377 = smul.addr %s376, 64
        %s378 = scalar_lea.vmem [#allocation12], %s377
        %p379 = pneg %p169
        %p380 = pneg %p166
        %p381 = pneg %p190
        %p382 = pneg %p187
        %s383 = smul.u32 8, %s28
        %s384 = smul.u32 8, %s28
        %p385 = scmp.eq.s32.totalorder %s28, 0
        // Predicated region
        $region65: #{tpu_custom_call.1} parent=43 // pred_check
          %p386 = pneg %p385
        $region66: #{tpu_custom_call.1} parent=43 // pred_check_branch
          %388 = sbr.rel (%p386) target = $region68
        $region67: #{tpu_custom_call.1} parent=43 // pred_region
          %389 = vst [vmem:[#allocation2] sm:$0x1f] 0.0
          %390 = vst [vmem:[#allocation2 + $0x8] sm:$0x1f] 0.0
          %391 = vst [vmem:[#allocation2 + $0x10] sm:$0x1f] 0.0
          %392 = vst [vmem:[#allocation2 + $0x18] sm:$0x1f] 0.0
          %393 = vst [vmem:[#allocation2 + $0x20] sm:$0x1f] 0.0
          %394 = vst [vmem:[#allocation2 + $0x28] sm:$0x1f] 0.0
          %395 = vst [vmem:[#allocation2 + $0x30] sm:$0x1f] 0.0
          %396 = vst [vmem:[#allocation2 + $0x38] sm:$0x1f] 0.0
          %397 = vst [vmem:[#allocation3] sm:$0xff] 0.0
          %s398 = scalar_lea.smem [#allocation14], 0
          %399 = sst [smem:[%s398]] 0.0
        $region68: #{tpu_custom_call.1} parent=43 // pred_fallthru
          _
        %v400 = vld [vmem:[%s316] sm:$0x1f]
        %v401 = vld [vmem:[%s316 + $0x8] sm:$0x1f]
        %v402 = vld [vmem:[%s316 + $0x10] sm:$0x1f]
        %v403 = vld [vmem:[%s316 + $0x18] sm:$0x1f]
        %v404 = vld [vmem:[%s316 + $0x20] sm:$0x1f]
        %v405 = vld [vmem:[%s316 + $0x28] sm:$0x1f]
        %v406 = vld [vmem:[%s316 + $0x30] sm:$0x1f]
        %v407 = vld [vmem:[%s316 + $0x38] sm:$0x1f]
        %v408 = vld [vmem:[%s325] sm:$0x1f]
        %v409 = vld [vmem:[%s325 + $0x8] sm:$0x1f]
        %v410 = vld [vmem:[%s325 + $0x10] sm:$0x1f]
        %v411 = vld [vmem:[%s325 + $0x18] sm:$0x1f]
        %v412 = vld [vmem:[%s325 + $0x20] sm:$0x1f]
        %v413 = vld [vmem:[%s325 + $0x28] sm:$0x1f]
        %v414 = vld [vmem:[%s325 + $0x30] sm:$0x1f]
        %v415 = vld [vmem:[%s325 + $0x38] sm:$0x1f]
        %v416 = vld [vmem:[%s1] sm:$0x1f]
        %v417 = vsub.f32 %v400, %v408
        %v418 = vsub.f32 %v401, %v409
        %v419 = vsub.f32 %v402, %v410
        %v420 = vsub.f32 %v403, %v411
        %v421 = vsub.f32 %v404, %v412
        %v422 = vsub.f32 %v405, %v413
        %v423 = vsub.f32 %v406, %v414
        %v424 = vsub.f32 %v407, %v415
        %426 = vset.pattern.permute.xlu0 0
        %427 = vperm.xlu0 %426, %v416
        %v428 = vpop.permute.xlu0 %427
        %v430 = vsub.f32 %v428, %v400
        %v431 = vsub.f32 %v428, %v401
        %v432 = vsub.f32 %v428, %v402
        %v433 = vsub.f32 %v428, %v403
        %v434 = vsub.f32 %v428, %v404
        %v435 = vsub.f32 %v428, %v405
        %v436 = vsub.f32 %v428, %v406
        %v437 = vsub.f32 %v428, %v407
        %v438 = vmax.f32 %v430, 0.0
        %v439 = vmax.f32 %v431, 0.0
        %v440 = vmax.f32 %v432, 0.0
        %v441 = vmax.f32 %v433, 0.0
        %v442 = vmax.f32 %v434, 0.0
        %v443 = vmax.f32 %v435, 0.0
        %v444 = vmax.f32 %v436, 0.0
        %v445 = vmax.f32 %v437, 0.0
        %446 = vset.pattern.permute.xlu0 1
        %447 = vperm.xlu0 %446, %v416
        %v448 = vpop.permute.xlu0 %447
        %v450 = vsub.f32 %v400, %v448
        %v451 = vsub.f32 %v401, %v448
        %v452 = vsub.f32 %v402, %v448
        %v453 = vsub.f32 %v403, %v448
        %v454 = vsub.f32 %v404, %v448
        %v455 = vsub.f32 %v405, %v448
        %v456 = vsub.f32 %v406, %v448
        %v457 = vsub.f32 %v407, %v448
        %v458 = vmax.f32 %v450, 0.0
        %v459 = vmax.f32 %v451, 0.0
        %v460 = vmax.f32 %v452, 0.0
        %v461 = vmax.f32 %v453, 0.0
        %v462 = vmax.f32 %v454, 0.0
        %v463 = vmax.f32 %v455, 0.0
        %v464 = vmax.f32 %v456, 0.0
        %v465 = vmax.f32 %v457, 0.0
        %v466 = vld [vmem:[#allocation2] sm:$0x1f]
        %v467 = vld [vmem:[#allocation2 + $0x8] sm:$0x1f]
        %v468 = vld [vmem:[#allocation2 + $0x10] sm:$0x1f]
        %v469 = vld [vmem:[#allocation2 + $0x18] sm:$0x1f]
        %v470 = vld [vmem:[#allocation2 + $0x20] sm:$0x1f]
        %v471 = vld [vmem:[#allocation2 + $0x28] sm:$0x1f]
        %v472 = vld [vmem:[#allocation2 + $0x30] sm:$0x1f]
        %v473 = vld [vmem:[#allocation2 + $0x38] sm:$0x1f]
        %v474 = vmul.f32 %v416, 0.0004
        %v475 = vmul.f32 %v417, %v417
        %v476 = vmul.f32 %v418, %v418
        %v477 = vmul.f32 %v419, %v419
        %v478 = vmul.f32 %v420, %v420
        %v479 = vmul.f32 %v421, %v421
        %v480 = vmul.f32 %v422, %v422
        %v481 = vmul.f32 %v423, %v423
        %v482 = vmul.f32 %v424, %v424
        %484 = vset.pattern.permute.xlu0 2
        %485 = vperm.xlu0 %484, %v474
        %v486 = vpop.permute.xlu0 %485
        %v488 = vmul.f32 %v486, %v475
        %v489 = vmul.f32 %v486, %v476
        %v490 = vmul.f32 %v486, %v477
        %v491 = vmul.f32 %v486, %v478
        %v492 = vmul.f32 %v486, %v479
        %v493 = vmul.f32 %v486, %v480
        %v494 = vmul.f32 %v486, %v481
        %v495 = vmul.f32 %v486, %v482
        %v496 = vmul.f32 %v438, %v438
        %v497 = vmul.f32 %v439, %v439
        %v498 = vmul.f32 %v440, %v440
        %v499 = vmul.f32 %v441, %v441
        %v500 = vmul.f32 %v442, %v442
        %v501 = vmul.f32 %v443, %v443
        %v502 = vmul.f32 %v444, %v444
        %v503 = vmul.f32 %v445, %v445
        %v504 = vmul.f32 %v458, %v458
        %v505 = vmul.f32 %v459, %v459
        %v506 = vmul.f32 %v460, %v460
        %v507 = vmul.f32 %v461, %v461
        %v508 = vmul.f32 %v462, %v462
        %v509 = vmul.f32 %v463, %v463
        %v510 = vmul.f32 %v464, %v464
        %v511 = vmul.f32 %v465, %v465
        %v512 = vadd.f32 %v496, %v504
        %v513 = vadd.f32 %v497, %v505
        %v514 = vadd.f32 %v498, %v506
        %v515 = vadd.f32 %v499, %v507
        %v516 = vadd.f32 %v500, %v508
        %v517 = vadd.f32 %v501, %v509
        %v518 = vadd.f32 %v502, %v510
        %v519 = vadd.f32 %v503, %v511
        %v520 = vadd.f32 %v488, %v512
        %v521 = vadd.f32 %v489, %v513
        %v522 = vadd.f32 %v490, %v514
        %v523 = vadd.f32 %v491, %v515
        %v524 = vadd.f32 %v492, %v516
        %v525 = vadd.f32 %v493, %v517
        %v526 = vadd.f32 %v494, %v518
        %v527 = vadd.f32 %v495, %v519
        %v528 = vadd.f32 %v466, %v520
        %v529 = vadd.f32 %v467, %v521
        %v530 = vadd.f32 %v468, %v522
        %v531 = vadd.f32 %v469, %v523
        %v532 = vadd.f32 %v470, %v524
        %v533 = vadd.f32 %v471, %v525
        %v534 = vadd.f32 %v472, %v526
        %v535 = vadd.f32 %v473, %v527
        %536 = vst [vmem:[#allocation2] sm:$0x1f] %v528
        %537 = vst [vmem:[#allocation2 + $0x8] sm:$0x1f] %v529
        %538 = vst [vmem:[#allocation2 + $0x10] sm:$0x1f] %v530
        %539 = vst [vmem:[#allocation2 + $0x18] sm:$0x1f] %v531
        %540 = vst [vmem:[#allocation2 + $0x20] sm:$0x1f] %v532
        %541 = vst [vmem:[#allocation2 + $0x28] sm:$0x1f] %v533
        %542 = vst [vmem:[#allocation2 + $0x30] sm:$0x1f] %v534
        %543 = vst [vmem:[#allocation2 + $0x38] sm:$0x1f] %v535
        %v544 = vld [vmem:[%s334] sm:$0xff]
        %v545 = vld [vmem:[%s343] sm:$0xff]
        %v546 = vsub.f32 %v544, %v545
        %v547 = vmul.f32 %v546, %v546
        %s548 = scalar_lea.vmem %s334, 8 [#allocation11]
        %v549 = vld [vmem:[%s548] sm:$0xff]
        %s550 = scalar_lea.vmem %s343, 8 [#allocation12]
        %v551 = vld [vmem:[%s550] sm:$0xff]
        %v552 = vsub.f32 %v549, %v551
        %v553 = vmul.f32 %v552, %v552
        %v554 = vadd.f32 %v547, %v553
        %s555 = scalar_lea.vmem %s334, 16 [#allocation11]
        %v556 = vld [vmem:[%s555] sm:$0xff]
        %s557 = scalar_lea.vmem %s343, 16 [#allocation12]
        %v558 = vld [vmem:[%s557] sm:$0xff]
        %v559 = vsub.f32 %v556, %v558
        %v560 = vmul.f32 %v559, %v559
        %v561 = vadd.f32 %v554, %v560
        %s562 = scalar_lea.vmem %s334, 24 [#allocation11]
        %v563 = vld [vmem:[%s562] sm:$0xff]
        %s564 = scalar_lea.vmem %s343, 24 [#allocation12]
        %v565 = vld [vmem:[%s564] sm:$0xff]
        %v566 = vsub.f32 %v563, %v565
        %v567 = vmul.f32 %v566, %v566
        %v568 = vadd.f32 %v561, %v567
        %s569 = scalar_lea.vmem %s334, 32 [#allocation11]
        %v570 = vld [vmem:[%s569] sm:$0xff]
        %s571 = scalar_lea.vmem %s343, 32 [#allocation12]
        %v572 = vld [vmem:[%s571] sm:$0xff]
        %v573 = vsub.f32 %v570, %v572
        %v574 = vmul.f32 %v573, %v573
        %v575 = vadd.f32 %v568, %v574
        %s576 = scalar_lea.vmem %s334, 40 [#allocation11]
        %v577 = vld [vmem:[%s576] sm:$0xff]
        %s578 = scalar_lea.vmem %s343, 40 [#allocation12]
        %v579 = vld [vmem:[%s578] sm:$0xff]
        %v580 = vsub.f32 %v577, %v579
        %v581 = vmul.f32 %v580, %v580
        %v582 = vadd.f32 %v575, %v581
        %s583 = scalar_lea.vmem %s334, 48 [#allocation11]
        %v584 = vld [vmem:[%s583] sm:$0xff]
        %s585 = scalar_lea.vmem %s343, 48 [#allocation12]
        %v586 = vld [vmem:[%s585] sm:$0xff]
        %v587 = vsub.f32 %v584, %v586
        %v588 = vmul.f32 %v587, %v587
        %v589 = vadd.f32 %v582, %v588
        %s590 = scalar_lea.vmem %s334, 56 [#allocation11]
        %v591 = vld [vmem:[%s590] sm:$0xff]
        %s592 = scalar_lea.vmem %s343, 56 [#allocation12]
        %v593 = vld [vmem:[%s592] sm:$0xff]
        %v594 = vsub.f32 %v591, %v593
        %v595 = vmul.f32 %v594, %v594
        %v596 = vadd.f32 %v589, %v595
        %s597 = sld [smem:[#allocation4]]
        %s598 = sld [smem:[#allocation4 + $0x1]]
        %s599 = sld [smem:[#allocation4 + $0x2]]
        %s600 = sld [smem:[#allocation4 + $0x3]]
        %s601 = sld [smem:[#allocation4 + $0x4]]
        %s602 = sld [smem:[#allocation4 + $0x5]]
        %s603 = sld [smem:[#allocation4 + $0x6]]
        %s604 = sld [smem:[#allocation4 + $0x7]]
        %v605 = vstv %s601
        %v606 = vmul.f32 %v544, %v605
        %v607 = vstv %s597
        %v608 = vadd.f32 %v606, %v607
        %v609 = vstv %s602
        %v610 = vmul.f32 %v549, %v609
        %v611 = vstv %s598
        %v612 = vadd.f32 %v610, %v611
        %v613 = vstv %s603
        %v614 = vmul.f32 %v556, %v613
        %v615 = vstv %s599
        %v616 = vadd.f32 %v614, %v615
        %v617 = vstv %s604
        %v618 = vmul.f32 %v563, %v617
        %v619 = vstv %s600
        %v620 = vadd.f32 %v618, %v619
        %v621 = vmul.f32 %v565, %v617
        %v622 = vadd.f32 %v621, %v619
        %v623 = vmul.f32 %v608, 1.47
        %v624 = vrcp.pop %v612
        %v625 = vmul.f32 %v623, %v624
        %v626 = vsub.f32 %v625, %v622
        %v627 = vsub.f32 %v620, 0.25
        %v628 = vmul.f32 %v627, 171216.5
        %v629 = vadd.f32 %v628, -49427.99
        %v630 = vmul.f32 %v629, %v627
        %v631 = vadd.f32 %v630, 14554.605
        %v632 = vmul.f32 %v631, %v627
        %v633 = vadd.f32 %v632, -4395.6523
        %v634 = vmul.f32 %v633, %v627
        %v635 = vadd.f32 %v634, 1372.7926
        %v636 = vmul.f32 %v635, %v627
        %v637 = vadd.f32 %v636, -449.14847
        %v638 = vmul.f32 %v637, %v627
        %v639 = vadd.f32 %v638, 157.44835
        %v640 = vmul.f32 %v639, %v627
        %v641 = vadd.f32 %v640, -61.816494
        %v642 = vmul.f32 %v641, %v627
        %v643 = vadd.f32 %v642, 30.337557
        %v644 = vmul.f32 %v643, %v627
        %v645 = vadd.f32 %v644, -29.777407
        %v646 = vmul.f32 %v645, %v627
        %v647 = vadd.f32 %v646, 3.3888125
        %v648 = vsub.f32 %v647, %v616
        %v649 = vld [vmem:[#allocation3] sm:$0xff]
        %v650 = vmul.f32 %v626, %v626
        %v651 = vmul.f32 %v648, %v648
        %v652 = vmul.f32 %v651, 0.1
        %v653 = vadd.f32 %v650, %v652
        %v654 = vmul.f32 %v653, 0.0004
        %v655 = vmul.f32 %v596, 0.005
        %v656 = vadd.f32 %v654, %v655
        %v657 = vadd.f32 %v649, %v656
        %658 = vst [vmem:[#allocation3] sm:$0xff] %v657
        %p659 = scmp.eq.s32.totalorder %s28, 2
        // Predicated region
        $region69: #{tpu_custom_call.1} parent=43 // pred_check
          %p660 = pneg %p659
        $region70: #{tpu_custom_call.1} parent=43 // pred_check_branch
          %662 = sbr.rel (%p660) target = $region72
        $region71: #{tpu_custom_call.1} parent=43 // pred_region
          %v663 = vld [vmem:[#allocation2] sm:$0x1f]
          %v664 = vld [vmem:[#allocation2 + $0x8] sm:$0x1f]
          %v665 = vld [vmem:[#allocation2 + $0x10] sm:$0x1f]
          %v666 = vld [vmem:[#allocation2 + $0x18] sm:$0x1f]
          %v667 = vld [vmem:[#allocation2 + $0x20] sm:$0x1f]
          %v668 = vld [vmem:[#allocation2 + $0x28] sm:$0x1f]
          %v669 = vld [vmem:[#allocation2 + $0x30] sm:$0x1f]
          %v670 = vld [vmem:[#allocation2 + $0x38] sm:$0x1f]
          %vm671 = vcmask 1044480
          %v672 = vsel %vm671, %v663, 0.0
          %v673 = vsel %vm671, %v664, 0.0
          %v674 = vadd.f32 %v672, %v673
          %v675 = vsel %vm671, %v665, 0.0
          %v676 = vadd.f32 %v674, %v675
          %v677 = vsel %vm671, %v666, 0.0
          %v678 = vadd.f32 %v676, %v677
          %v679 = vsel %vm671, %v667, 0.0
          %v680 = vadd.f32 %v678, %v679
          %v681 = vsel %vm671, %v668, 0.0
          %v682 = vadd.f32 %v680, %v681
          %v683 = vsel %vm671, %v669, 0.0
          %v684 = vadd.f32 %v682, %v683
          %v685 = vsel %vm671, %v670, 0.0
          %v686 = vadd.f32 %v684, %v685
          %687 = vadd.xlane.f32.xlu0 %v686
          %v688 = vpop.xlane.xlu0 %687
          %v689 = vrot.slane %v688, 4
          %v690 = vadd.f32 %v688, %v689
          %v691 = vrot.slane %v690, 2
          %v692 = vadd.f32 %v690, %v691
          %v693 = vrot.slane %v692, 1
          %v694 = vadd.f32 %v692, %v693
          %s695 = vtos %v694
          %v696 = vld [vmem:[#allocation3] sm:$0xff]
          %697 = vadd.xlane.f32.xlu0 %v696
          %v698 = vpop.xlane.xlu0 %697
          %v699 = vrot.slane %v698, 4
          %v700 = vadd.f32 %v698, %v699
          %v701 = vrot.slane %v700, 2
          %v702 = vadd.f32 %v700, %v701
          %v703 = vrot.slane %v702, 1
          %v704 = vadd.f32 %v702, %v703
          %s705 = vtos %v704
          %s706 = sadd.f32 %s695, %s705
          %s707 = scalar_lea.smem [#allocation14], 0
          %708 = sst [smem:[%s707]] %s706
        $region72: #{tpu_custom_call.1} parent=43 // pred_fallthru
          _
        // Predicated region
        $region73: #{tpu_custom_call.1} parent=43 // pred_check
          %p709 = pneg %p187
        $region74: #{tpu_custom_call.1} parent=43 // pred_check_branch
          %711 = sbr.rel (%p709) target = $region76
        $region75: #{tpu_custom_call.1} parent=43 // pred_region
          %s713 = ssub.s32 16, 16
          %714 = vsyncadd [#allocation6], %s713
          %717 = dma.smem_to_hbm [#allocation14], 16, %s6, [#allocation6]
        $region76: #{tpu_custom_call.1} parent=43 // pred_fallthru
          _
        // Predicated region
        $region77: #{tpu_custom_call.1} parent=43 // pred_check
          %p718 = pneg %p187
        $region78: #{tpu_custom_call.1} parent=43 // pred_check_branch
          %720 = sbr.rel (%p718) target = $region80
        $region79: #{tpu_custom_call.1} parent=43 // pred_region
          %721 = dma.done [#allocation6], 16
        $region80: #{tpu_custom_call.1} parent=43 // pred_fallthru
          _
        %722 = sfence
      $region44: #{tpu_custom_call.1} parent=5 // pred_fallthru
        _
      %p723 = scmp.le.s32.totalorder 2, %s23
      // Predicated region
      $region81: #{tpu_custom_call.1} parent=5 // pred_check
        %p724 = pneg %p723
      $region82: #{tpu_custom_call.1} parent=5 // pred_check_branch
        %726 = sbr.rel (%p724) target = $region84
      $region83: #{tpu_custom_call.1} parent=5 // pred_region
        %s727 = ssub.s32 %s23, 2
      $region84: #{tpu_custom_call.1} parent=5 // pred_fallthru
        _
    $region6: #{tpu_custom_call.1} parent=1 // loop_footer
      %s27 = sadd.s32 1, %s23
    $region7: #{tpu_custom_call.1} parent=1 // loop_footer_branch
      %22 = sbr.rel target = $region3
    $region8: #{tpu_custom_call.1} parent=1 // loop_exit
      _
    %728 = vsyncpa [#allocation5], 1
    %s729 = scalar_lea.sflag [#allocation5], 1
    %730 = vsyncpa %s729, 1
    %731 = vsyncpa [#allocation10], 1
    %s732 = scalar_lea.sflag [#allocation10], 1
    %733 = vsyncpa %s732, 1
    %734 = vsyncpa [#allocation13], 1
    %s735 = scalar_lea.sflag [#allocation13], 1
    %736 = vsyncpa %s735, 1
    %737 = vsyncpa [#allocation6], 1
    %s738 = scalar_lea.sflag [#allocation6], 1
    %739 = vsyncpa %s738, 1
    %740 = vsyncpa [#allocation7], 1
    %s741 = scalar_lea.sflag [#allocation7], 1
    %742 = vsyncpa %s741, 1

</llo_original>
